<compile_context>
chip_gen: v5e
topology: v5e:2x2
jax: 0.10.0
libtpu: 0.0.40
codegen_flags: <defaults>
</compile_context>

<pallas_src>
import math

import jax
import jax.numpy as jnp
from jax.experimental import pallas as pl
from jax.experimental.pallas import tpu as pltpu


def make_positional_encoding(d_model: int, max_len: int) -> jnp.ndarray:
    """Deterministic buffer identical to the PyTorch __init__ (kept as (maxLen, dModel))."""
    position = jnp.arange(0, max_len, dtype=jnp.float32)[:, None]            # (maxLen, 1)
    denominator = jnp.exp(
        jnp.arange(0, d_model, 2, dtype=jnp.float32) * (math.log(10000.0) / d_model)
    )                                                                         # (ceil(D/2),)
    ang = position / denominator                                              # (maxLen, ceil(D/2))
    pe = jnp.zeros((max_len, d_model), dtype=jnp.float32)
    pe = pe.at[:, 0::2].set(jnp.sin(ang))
    pe = pe.at[:, 1::2].set(jnp.cos(ang)[:, : d_model // 2])                  # odd-D safe
    return pe


def _pe_add_kernel(x_ref, pe_ref, o_ref):
    # x_ref, pe_ref, o_ref: (tT, W) lane-dense tiles.  Plain VPU add, full-width stores.
    o_ref[...] = x_ref[...] + pe_ref[...]


def _pe_add_pallas(x2, pe2, n_col_blocks, block_rows, out_dtype):
    """x2: (T, Wtot), pe2: (T, Wtot // n_col_blocks). Returns x2 + broadcast(pe2)."""
    T, w_total = x2.shape
    W = w_total // n_col_blocks
    grid = (pl.cdiv(T, block_rows), n_col_blocks)   # batch axis innermost -> pe tile is reused

    return pl.pallas_call(
        _pe_add_kernel,
        out_shape=jax.ShapeDtypeStruct((T, w_total), out_dtype),
        grid_spec=pltpu.PrefetchScalarGridSpec(
            num_scalar_prefetch=0,
            grid=grid,
            in_specs=[
                pl.BlockSpec((block_rows, W), lambda i, b: (i, b)),   # x
                pl.BlockSpec((block_rows, W), lambda i, b: (i, 0)),   # pe (constant in b)
            ],
            out_specs=pl.BlockSpec((block_rows, W), lambda i, b: (i, b)),
        ),
        compiler_params=pltpu.CompilerParams(
            dimension_semantics=("parallel", "parallel"),
        ),
    )(x2, pe2)


def positional_encoding_forward(
    x: jnp.ndarray,
    pe_table: jnp.ndarray,
    *,
    force_pallas: bool = False,
    min_pallas_bytes: int = 1 << 16,
    block_rows: int | None = None,
) -> jnp.ndarray:
    """x: (T, B, D); pe_table: (maxLen, D). Returns x + pe[:T] broadcast over the batch axis."""
    T, B, D = x.shape
    pe = pe_table[:T, :]                                   # (T, D)
    out_dtype = jnp.promote_types(x.dtype, pe.dtype)

    if not force_pallas and x.size * x.dtype.itemsize < min_pallas_bytes:
        # Tiny inputs: pallas_call + DMA setup overhead dominates; let XLA fuse the add.
        return (x + pe[:, None, :]).astype(out_dtype)

    x2 = x.reshape(T, B * D)                               # contiguous -> free reshape

    lane_aligned = (D % 128 == 0) or (B == 1)
    if lane_aligned:
        # Primary path: lane-dense (tT, D) blocks, grid (T_tiles, B); pe streamed once per tile.
        pe2 = pe
        n_col_blocks = B
        W = D
    else:
        # Fallback (D not a multiple of 128 with B > 1): pre-broadcast pe across batch so the
        # single column block keeps the full lane-dense row width B*D (extra pe traffic, but
        # every block stays legal w.r.t. the (8, 128) tiling rule).
        pe2 = jnp.tile(pe, (1, B))                         # (T, B*D)
        n_col_blocks = 1
        W = B * D

    if block_rows is None:
        bytes_per_row = W * x.dtype.itemsize
        target_block_bytes = 1 << 20                       # ~1 MiB per x block
        block_rows = max(8, (target_block_bytes // max(bytes_per_row, 1)) // 8 * 8)
    if block_rows >= T:
        block_rows = T                                     # block == full dim: always legal
    # else: block_rows is a multiple of 8; pl.cdiv + masked last block handle any remainder
    # (elementwise op, so padded garbage rows never reach valid outputs).

    out2 = _pe_add_pallas(x2, pe2, n_col_blocks, block_rows, out_dtype)
    return out2.reshape(T, B, D)


if __name__ == "__main__":
    key = jax.random.PRNGKey(0)
    MAX_LEN = 64

    # (T, B, D) test cases: primary lane-aligned path, fallback path, and a tiled/remainder case.
    cases = [
        # (T, B, D, block_rows override)
        (8, 2, 128, None),   # primary path: D % 128 == 0, single t-tile
        (16, 2, 32, None),   # fallback path: D < 128 with B > 1 -> pe pre-broadcast
        (40, 2, 128, 16),    # primary path with multiple t-tiles + remainder block (40 = 2*16 + 8)
        (24, 1, 96, None),   # B == 1 path: single lane-dense column block of width D
    ]

    for idx, (T, B, D, br) in enumerate(cases):
        key, sub = jax.random.split(key)
        x = jax.random.normal(sub, (T, B, D), dtype=jnp.float32)
        pe_table = make_positional_encoding(d_model=D, max_len=MAX_LEN)

        out = positional_encoding_forward(x, pe_table, force_pallas=True, block_rows=br)
        out = jax.block_until_ready(out)

        # Reference (mirrors PyTorch broadcast of pe[:T, :, :]).
        ref = x + pe_table[:T, :][:, None, :]
        assert out.shape == (T, B, D), f"case {idx}: bad shape {out.shape}"
        assert jnp.allclose(out, ref, atol=1e-6), f"case {idx}: mismatch vs reference"

    print("KERNEL_OK")
</pallas_src>

<mosaic_0001>
module attributes {stable_mosaic.version = 11 : i64} {
  func.func @_pe_add_kernel(%arg0: i32, %arg1: i32, %arg2: memref<8x128xf32, #tpu.memory_space<vmem>>, %arg3: memref<8x128xf32, #tpu.memory_space<vmem>>, %arg4: memref<8x128xf32, #tpu.memory_space<vmem>>) attributes {dimension_semantics = [#tpu.dimension_semantics<parallel>, #tpu.dimension_semantics<parallel>], iteration_bounds = array<i64: 1, 2>, scalar_prefetch = 0 : i64, scratch_operands = 0 : i64, tpu.core_type = #tpu.core_type<tc>, window_params = [{transform_indices = @transform_0, window_bounds = array<i64: 8, 128>}, {transform_indices = @transform_1, window_bounds = array<i64: 8, 128>}, {transform_indices = @transform_2, window_bounds = array<i64: 8, 128>}]} {
    %c0 = arith.constant 0 : index
    %c0_0 = arith.constant 0 : index
    %0 = vector.load %arg2[%c0, %c0_0] : memref<8x128xf32, #tpu.memory_space<vmem>>, vector<8x128xf32>
    %c0_1 = arith.constant 0 : index
    %c0_2 = arith.constant 0 : index
    %1 = vector.load %arg3[%c0_1, %c0_2] : memref<8x128xf32, #tpu.memory_space<vmem>>, vector<8x128xf32>
    %2 = arith.addf %0, %1 : vector<8x128xf32>
    %c0_3 = arith.constant 0 : index
    %c0_4 = arith.constant 0 : index
    %3 = vector.load %arg4[%c0_3, %c0_4] : memref<8x128xf32, #tpu.memory_space<vmem>>, vector<8x128xf32>
    tpu.vector_store %arg4[%c0_3, %c0_4], %2 {strides = array<i32>} : memref<8x128xf32, #tpu.memory_space<vmem>>, vector<8x128xf32>,
    return
  }
  func.func @transform_0(%arg0: i32, %arg1: i32) -> (i32, i32) {
    %c0_i32 = arith.constant 0 : i32
    return %arg0, %arg1 : i32, i32
  }
  func.func @transform_1(%arg0: i32, %arg1: i32) -> (i32, i32) {
    %c0_i32 = arith.constant 0 : i32
    %c0_i32_0 = arith.constant 0 : i32
    return %arg0, %c0_i32 : i32, i32
  }
  func.func @transform_2(%arg0: i32, %arg1: i32) -> (i32, i32) {
    %c0_i32 = arith.constant 0 : i32
    return %arg0, %arg1 : i32, i32
  }
}

</mosaic_0001>

<llo_original>
// kernel: tpu_custom_call.1
$region0: #{tpu_custom_call.1}
  #allocation0 [shape = 'u32[]', space=smem, size = 0x4, offset = 0x4, fixed_abs, tag = 'smem constant byte address 0x4 - core index']
  #allocation1 [shape = 'u32[72,128]{1,0:T(1,128)}', space=vmem, size = 0x9000, scoped, tag = 'internal scratch']
  %s0 = inlined_call_operand.hbm [shape: f32[8,256], index: 0, kind: input, shape index: {}]
  %s1 = inlined_call_operand.hbm [shape: f32[8,128], index: 1, kind: input, shape index: {}]
  %s2 = inlined_call_operand.hbm [shape: f32[8,256], index: 2, kind: output, shape index: {}]
  %s3 = sld [smem:[#allocation0]]
  $region49: #{tpu_custom_call.1} parent=0
    _
  %s5 = ssub.s32 1, %s3
  %s6 = scalar_select 0, %s5, %s3
  $region1: #{tpu_custom_call.1} parent=0
    #allocation2 [shape = 'u8[8192]{0}', space=vmem, size = 0x2000, scoped, tag = 'input window, operand 0']
    #allocation3 [shape = 's32[2]{0}', space=sflag, size = 0x8, scoped, tag = 'scoped memory for tpu_custom_call.1']
    #allocation4 [shape = 's32[2]{0}', space=sflag, size = 0x8, scoped, tag = 'scoped memory for tpu_custom_call.1']
    #allocation5 [shape = 'u8[4096]{0}', space=vmem, size = 0x1000, scoped, tag = 'input window, operand 1, single buffered']
    #allocation6 [shape = 's32[1]{0}', space=sflag, size = 0x4, scoped, tag = 'scoped memory for tpu_custom_call.1']
    #allocation7 [shape = 'u8[8192]{0}', space=vmem, size = 0x2000, scoped, tag = 'output window, operand 0']
    %7 = vsyncpa [#allocation3], 0
    %s8 = scalar_lea.sflag [#allocation3], 1
    %9 = vsyncpa %s8, 0
    %10 = vsyncpa [#allocation6], 0
    %11 = vsyncpa [#allocation4], 0
    %s12 = scalar_lea.sflag [#allocation4], 1
    %13 = vsyncpa %s12, 0
    loop: start=0, step=1, limit=4
    $region2: #{tpu_custom_call.1} parent=1 // loop_pre_header
      _
    $region3: #{tpu_custom_call.1} parent=1 // loop_header
      %s15 = sphi 0, %s19
      %p16 = scmp.ge.s32.totalorder %s15, 4
      %s22 = sphi 0, %s34
      %s23 = sphi 0, %s30
      %s24 = sphi 0, %s22
      %s25 = sphi 0, %s23
      %s26 = sphi 0, %s24
      %s27 = sphi 0, %s25
      %s39 = sphi 0, %s41
      %s42 = sphi 0, %s39
      %s43 = sphi 0, %s42
      %s59 = sphi 0, %s43
      %s65 = sphi 0, %s67
      %s68 = sphi 0, %s65
      %s69 = sphi 0, %s68
      %s85 = sphi 0, %s69
      %s93 = sphi 0, %s95
      %s96 = sphi 0, %s93
      %s97 = sphi 0, %s96
      %s113 = sphi 0, %s97
    $region4: #{tpu_custom_call.1} parent=1 // loop_header_branch
      %18 = sbr.rel (%p16) target = $region8
    $region5: #{tpu_custom_call.1} parent=1 // loop_body
      %s20 = ssub.s32 %s15, 1
      %s21 = ssub.s32 %s15, 2
      %s28 = sadd.s32 1, %s23
      %p29 = scmp.ge.s32.totalorder %s28, 2
      %s30 = scalar_select %p29, 0, %s28
      %s31 = sadd.s32 1, %s22
      %s32 = scalar_select %p29, %s31, %s22
      %p33 = scmp.ge.s32.totalorder %s32, 1
      %s34 = scalar_select %p33, 0, %s32
      %s35 = ssub.s32 %s22, %s34
      %s36 = ssub.s32 %s23, %s30
      %s37 = sor.u32 %s35, %s36
      %p38 = scmp.eq.s32.totalorder %s37, 0
      %s40 = sadd.s32 %s39, 1
      %s41 = scalar_select %p38, %s39, %s40
      %p44 = pneg %p38
      %p45 = scmp.eq.s32.totalorder %s15, 1
      %p46 = por %p44, %p45
      %p47 = scmp.ne.s32.totalorder %s39, %s42
      %p48 = scmp.eq.s32.totalorder %s15, 0
      %p49 = por %p47, %p48
      %p50 = scmp.ne.s32.totalorder %s39, %s42
      %p51 = scmp.eq.s32.totalorder %s20, 1
      %p52 = por %p50, %p51
      %p53 = scmp.ne.s32.totalorder %s42, %s43
      %p54 = scmp.eq.s32.totalorder %s20, 0
      %p55 = por %p53, %p54
      %p56 = scmp.ne.s32.totalorder %s42, %s43
      %p57 = scmp.eq.s32.totalorder %s21, 1
      %p58 = por %p56, %p57
      %p60 = scmp.ne.s32.totalorder %s43, %s59
      %p61 = scmp.eq.s32.totalorder %s21, 0
      %p62 = por %p60, %p61
      %s63 = ssub.s32 %s22, %s34
      %p64 = scmp.eq.s32.totalorder %s63, 0
      %s66 = sadd.s32 %s65, 1
      %s67 = scalar_select %p64, %s65, %s66
      %p70 = pneg %p64
      %p71 = scmp.eq.s32.totalorder %s15, 1
      %p72 = por %p70, %p71
      %p73 = scmp.ne.s32.totalorder %s65, %s68
      %p74 = scmp.eq.s32.totalorder %s15, 0
      %p75 = por %p73, %p74
      %p76 = scmp.ne.s32.totalorder %s65, %s68
      %p77 = scmp.eq.s32.totalorder %s20, 1
      %p78 = por %p76, %p77
      %p79 = scmp.ne.s32.totalorder %s68, %s69
      %p80 = scmp.eq.s32.totalorder %s20, 0
      %p81 = por %p79, %p80
      %p82 = scmp.ne.s32.totalorder %s68, %s69
      %p83 = scmp.eq.s32.totalorder %s21, 1
      %p84 = por %p82, %p83
      %p86 = scmp.ne.s32.totalorder %s69, %s85
      %p87 = scmp.eq.s32.totalorder %s21, 0
      %p88 = por %p86, %p87
      %s89 = ssub.s32 %s22, %s34
      %s90 = ssub.s32 %s23, %s30
      %s91 = sor.u32 %s89, %s90
      %p92 = scmp.eq.s32.totalorder %s91, 0
      %s94 = sadd.s32 %s93, 1
      %s95 = scalar_select %p92, %s93, %s94
      %p98 = pneg %p92
      %p99 = scmp.eq.s32.totalorder %s15, 1
      %p100 = por %p98, %p99
      %p101 = scmp.ne.s32.totalorder %s93, %s96
      %p102 = scmp.eq.s32.totalorder %s15, 0
      %p103 = por %p101, %p102
      %p104 = scmp.ne.s32.totalorder %s93, %s96
      %p105 = scmp.eq.s32.totalorder %s20, 1
      %p106 = por %p104, %p105
      %p107 = scmp.ne.s32.totalorder %s96, %s97
      %p108 = scmp.eq.s32.totalorder %s20, 0
      %p109 = por %p107, %p108
      %p110 = scmp.ne.s32.totalorder %s96, %s97
      %p111 = scmp.eq.s32.totalorder %s21, 1
      %p112 = por %p110, %p111
      %p114 = scmp.ne.s32.totalorder %s97, %s113
      %p115 = scmp.eq.s32.totalorder %s21, 0
      %p116 = por %p114, %p115
      %p117 = scmp.le.s32.totalorder 1, %s15
      %p118 = scmp.lt.s32.totalorder %s15, 3
      %p119 = pnand %p117, %p118
      %p120 = pneg %p119
      // Predicated region
      $region9: #{tpu_custom_call.1} parent=5 // pred_check
        _
      $region10: #{tpu_custom_call.1} parent=5 // pred_check_branch
        %122 = sbr.rel (%p119) target = $region12
      $region11: #{tpu_custom_call.1} parent=5 // pred_region
        %s123 = ssub.s32 %s15, 1
        // Predicated region
        $region13: #{tpu_custom_call.1} parent=11 // pred_check
          %p124 = pneg %p81
        $region14: #{tpu_custom_call.1} parent=11 // pred_check_branch
          %126 = sbr.rel (%p124) target = $region16
        $region15: #{tpu_custom_call.1} parent=11 // pred_region
          %128 = vsyncadd [#allocation6], 0
          %s129 = smul.addr %s24, 8
          %s130 = scalar_lea.hbm %s1, %s129
          %s132 = sshll.u32 %s130, 4
          %s133 = int_to_ptr.hbm [resolvable:$true] %s132
          %s134 = sshll.u32 [#allocation5], 4
          %s135 = int_to_ptr.vmem [resolvable:$true] %s134
          %137 = dma.hbm_to_vmem [thread:$0]  %s133, 128, %s135, [#allocation6]
        $region16: #{tpu_custom_call.1} parent=11 // pred_fallthru
          _
      $region12: #{tpu_custom_call.1} parent=5 // pred_fallthru
        _
      %p138 = scmp.lt.s32.totalorder %s15, 2
      // Predicated region
      $region17: #{tpu_custom_call.1} parent=5 // pred_check
        %p139 = pneg %p138
      $region18: #{tpu_custom_call.1} parent=5 // pred_check_branch
        %141 = sbr.rel (%p139) target = $region20
      $region19: #{tpu_custom_call.1} parent=5 // pred_region
        // Predicated region
        $region21: #{tpu_custom_call.1} parent=19 // pred_check
          %p142 = pneg %p49
        $region22: #{tpu_custom_call.1} parent=19 // pred_check_branch
          %144 = sbr.rel (%p142) target = $region24
        $region23: #{tpu_custom_call.1} parent=19 // pred_region
          %s145 = sand.u32 %s39, 1
          %s146 = scalar_lea.sflag [#allocation3], %s145
          %s147 = sand.u32 %s39, 1
          %s148 = smul.addr %s147, 8
          %s149 = scalar_lea.vmem [#allocation2], %s148
          %151 = vsyncadd %s146, 0
          %s152 = smul.addr %s22, 2
          %s153 = sadd.s32 %s23, %s152
          %s154 = smul.addr %s153, 8
          %s155 = scalar_lea.hbm %s0, %s154
          %s157 = sshll.u32 %s155, 4
          %s158 = int_to_ptr.hbm [resolvable:$true] %s157
          %s159 = sshll.u32 %s149, 4
          %s160 = int_to_ptr.vmem [resolvable:$true] %s159
          %162 = dma.hbm_to_vmem [thread:$0]  %s158, 128, %s160, %s146
        $region24: #{tpu_custom_call.1} parent=19 // pred_fallthru
          _
      $region20: #{tpu_custom_call.1} parent=5 // pred_fallthru
        _
      %p163 = scmp.le.s32.totalorder 1, %s15
      %p164 = scmp.lt.s32.totalorder %s15, 3
      %p165 = pnand %p163, %p164
      %p166 = pneg %p165
      // Predicated region
      $region25: #{tpu_custom_call.1} parent=5 // pred_check
        _
      $region26: #{tpu_custom_call.1} parent=5 // pred_check_branch
        %168 = sbr.rel (%p165) target = $region28
      $region27: #{tpu_custom_call.1} parent=5 // pred_region
        %s169 = ssub.s32 %s15, 1
        %s170 = sand.u32 %s42, 1
        %s171 = scalar_lea.sflag [#allocation3], %s170
        %s172 = sand.u32 %s42, 1
        %s173 = smul.addr %s172, 8
        %s174 = scalar_lea.vmem [#allocation2], %s173
        // Predicated region
        $region29: #{tpu_custom_call.1} parent=27 // pred_check
          %p175 = pneg %p55
        $region30: #{tpu_custom_call.1} parent=27 // pred_check_branch
          %177 = sbr.rel (%p175) target = $region32
        $region31: #{tpu_custom_call.1} parent=27 // pred_region
          %179 = dma.done %s171, 128
        $region32: #{tpu_custom_call.1} parent=27 // pred_fallthru
          _
        // Predicated region
        $region33: #{tpu_custom_call.1} parent=27 // pred_check
          %p180 = pneg %p81
        $region34: #{tpu_custom_call.1} parent=27 // pred_check_branch
          %182 = sbr.rel (%p180) target = $region36
        $region35: #{tpu_custom_call.1} parent=27 // pred_region
          %184 = dma.done [#allocation6], 128
        $region36: #{tpu_custom_call.1} parent=27 // pred_fallthru
          _
        %s185 = sand.u32 %s42, 1
        %s186 = scalar_lea.sflag [#allocation3], %s185
        %s187 = sand.u32 %s42, 1
        %s188 = smul.addr %s187, 8
        %s189 = scalar_lea.vmem [#allocation2], %s188
        %p190 = pneg %p55
        %p191 = pneg %p52
        %p192 = pneg %p81
        %p193 = pneg %p78
        %p194 = pneg %p109
        %p195 = pneg %p106
        %s196 = sand.u32 %s96, 1
        %s197 = scalar_lea.sflag [#allocation4], %s196
        %s198 = sand.u32 %s96, 1
        %s199 = smul.addr %s198, 8
        %s200 = scalar_lea.vmem [#allocation7], %s199
        %v201 = vld [vmem:[%s174] sm:$0xff]
        %v202 = vld [vmem:[#allocation5] sm:$0xff]
        %v203 = vadd.f32 %v201, %v202
        %204 = vst [vmem:[%s200] sm:$0xff] %v203
        %s205 = sand.u32 %s96, 1
        %s206 = scalar_lea.sflag [#allocation4], %s205
        %s207 = sand.u32 %s96, 1
        %s208 = smul.addr %s207, 8
        %s209 = scalar_lea.vmem [#allocation7], %s208
        // Predicated region
        $region37: #{tpu_custom_call.1} parent=27 // pred_check
          %p210 = pneg %p106
        $region38: #{tpu_custom_call.1} parent=27 // pred_check_branch
          %212 = sbr.rel (%p210) target = $region40
        $region39: #{tpu_custom_call.1} parent=27 // pred_region
          %214 = vsyncadd %s206, 0
          %s215 = smul.addr %s24, 2
          %s216 = sadd.s32 %s25, %s215
          %s217 = smul.addr %s216, 8
          %s218 = scalar_lea.hbm %s2, %s217
          %s220 = sshll.u32 %s209, 4
          %s221 = int_to_ptr.vmem [resolvable:$true] %s220
          %s222 = sshll.u32 %s218, 4
          %s223 = int_to_ptr.hbm [resolvable:$true] %s222
          %225 = dma.vmem_to_hbm [thread:$0]  %s221, 128, %s223, %s206
        $region40: #{tpu_custom_call.1} parent=27 // pred_fallthru
          _
      $region28: #{tpu_custom_call.1} parent=5 // pred_fallthru
        _
      %p226 = scmp.le.s32.totalorder 2, %s15
      // Predicated region
      $region41: #{tpu_custom_call.1} parent=5 // pred_check
        %p227 = pneg %p226
      $region42: #{tpu_custom_call.1} parent=5 // pred_check_branch
        %229 = sbr.rel (%p227) target = $region44
      $region43: #{tpu_custom_call.1} parent=5 // pred_region
        %s230 = ssub.s32 %s15, 2
        // Predicated region
        $region45: #{tpu_custom_call.1} parent=43 // pred_check
          %p231 = pneg %p112
        $region46: #{tpu_custom_call.1} parent=43 // pred_check_branch
          %233 = sbr.rel (%p231) target = $region48
        $region47: #{tpu_custom_call.1} parent=43 // pred_region
          %s234 = sand.u32 %s97, 1
          %s235 = scalar_lea.sflag [#allocation4], %s234
          %s236 = sand.u32 %s97, 1
          %s237 = smul.addr %s236, 8
          %s238 = scalar_lea.vmem [#allocation7], %s237
          %240 = dma.done %s235, 128
        $region48: #{tpu_custom_call.1} parent=43 // pred_fallthru
          _
      $region44: #{tpu_custom_call.1} parent=5 // pred_fallthru
        _
    $region6: #{tpu_custom_call.1} parent=1 // loop_footer
      %s19 = sadd.s32 1, %s15
    $region7: #{tpu_custom_call.1} parent=1 // loop_footer_branch
      %14 = sbr.rel target = $region3
    $region8: #{tpu_custom_call.1} parent=1 // loop_exit
      _
    %241 = vsyncpa [#allocation3], 1
    %s242 = scalar_lea.sflag [#allocation3], 1
    %243 = vsyncpa %s242, 1
    %244 = vsyncpa [#allocation6], 1
    %245 = vsyncpa [#allocation4], 1
    %s246 = scalar_lea.sflag [#allocation4], 1
    %247 = vsyncpa %s246, 1

</llo_original>
